<compile_context>
chip_gen: v6e
topology: v6e:2x2x1
jax: 0.10.0
libtpu: 0.0.40
codegen_flags: <defaults>
</compile_context>

<pallas_src>
import functools
import math

import jax
import jax.numpy as jnp
from jax.experimental import pallas as pl
from jax.experimental.pallas import tpu as pltpu

_GELU_C = math.sqrt(2.0 / math.pi)
_MIB = 1024 * 1024


def _round_up(v, n):
    return ((v + n - 1) // n) * n


def _device_kind():
    try:
        return jax.devices()[0].device_kind.lower()
    except Exception:
        return ""


def _vmem_capacity_bytes(kind):
    try:
        return int(pltpu.get_tpu_info().vmem_capacity_bytes)
    except Exception:
        pass
    if "v7" in kind:
        return 64 * _MIB
    if "v5" in kind or "v6" in kind:
        return 128 * _MIB
    return 64 * _MIB  # unknown generation -> conservative, valid everywhere


def _gelu(h):
    # tanh-approx GELU: 0.5*x*(1 + tanh(sqrt(2/pi)*(x + 0.044715*x^3)))
    return 0.5 * h * (1.0 + jnp.tanh(_GELU_C * (h + 0.044715 * (h * h * h))))


def _ffn_kernel(x_ref, w1_ref, b1_ref, w2_ref, b2_ref, o_ref, acc_ref, *,
                gelu_in_bf16):
    # x_ref:(tm,dm_p)  w1_ref:(dm_p,tdff)  b1_ref:(1,tdff)
    # w2_ref:(tdff,dm_p) b2_ref:(1,dm_p)   o_ref:(tm,dm_p)  acc_ref:(tm,dm_p) f32
    k = pl.program_id(1)

    @pl.when(k == 0)
    def _():
        acc_ref[...] = jnp.zeros_like(acc_ref)

    # First matmul in the stored (bf16) dtype, f32 accumulation on the MXU.
    h = jnp.dot(x_ref[...], w1_ref[...], preferred_element_type=jnp.float32)
    h = h + b1_ref[...].astype(jnp.float32)

    if gelu_in_bf16:
        # v6e/v7x: bf16 VPU/EUP path, halves the (tm, tdff) intermediate footprint.
        g = _gelu(h.astype(jnp.bfloat16))
    else:
        # v5e: no bf16 VPU/EUP — keep the transcendental math in f32.
        g = _gelu(h)

    # Second matmul, accumulated over d_ff chunks in the f32 scratch.
    acc_ref[...] += jnp.dot(g.astype(w2_ref.dtype), w2_ref[...],
                            preferred_element_type=jnp.float32)

    @pl.when(k == pl.num_programs(1) - 1)
    def _():
        o_ref[...] = (acc_ref[...]
                      + b2_ref[...].astype(jnp.float32)).astype(o_ref.dtype)


@functools.partial(jax.jit, static_argnames=("tm", "compute_dtype"))
def positionwise_feed_forward(x, w1, b1, w2, b2, *, tm=None,
                              compute_dtype=jnp.bfloat16):
    """x: (batch, seq, d_model) -> (batch, seq, d_model)."""
    batch, seq, d_model = x.shape
    d_ff = w1.shape[1]
    m = batch * seq

    kind = _device_kind()
    is_v5_or_older = any(v in kind for v in ("v2", "v3", "v4", "v5"))
    gelu_in_bf16 = (not is_v5_or_older) and (
        jnp.dtype(compute_dtype) == jnp.dtype(jnp.bfloat16))

    # --- feature-dim alignment: 256 on v6e/v7x (2x256x256 MXU), else 128 ---
    def _align(d):
        mult = 128 if (is_v5_or_older or d <= 128) else 256
        return _round_up(d, mult)

    dm_p = _align(d_model)
    dff_p = _align(d_ff)

    # --- row tile: 512 on v6e/v7x, 256 on v5e; keep >=2 grid steps for small m
    #     so both v7x TensorCores get work ---------------------------------
    if tm is None:
        tm = 256 if is_v5_or_older else 512
    tm_eff = max(8, min(tm, _round_up(-(-m // 2), 8)))

    # --- generation-aware VMEM budget -------------------------------------
    cap = _vmem_capacity_bytes(kind)
    budget = int(0.85 * cap)
    cd_bytes = jnp.dtype(compute_dtype).itemsize
    out_bytes = jnp.dtype(x.dtype).itemsize

    def _est(tm_, tdff_, resident):
        wbuf = 1 if resident else 2                      # Buffered(1) vs streamed
        return (wbuf * 2 * dm_p * tdff_ * cd_bytes       # w1 + w2
                + wbuf * (tdff_ + dm_p) * 4              # b1 + b2
                + 2 * tm_ * dm_p * cd_bytes              # x tile (double-buffered)
                + 2 * tm_ * dm_p * out_bytes             # out tile (double-buffered)
                + tm_ * dm_p * 4                         # f32 accumulator scratch
                + 3 * tm_ * tdff_ * 4                    # h / g intermediates
                + 2 * tm_ * dm_p * 4)                    # pre-store f32 temps

    # Fully-resident weights if they fit; otherwise stream d_ff chunks along the
    # 'arbitrary' grid axis.  If still over budget, shrink the row tile.
    tdff = dff_p
    while _est(tm_eff, tdff, tdff == dff_p) > budget and tdff > 256:
        tdff = max(256, _round_up(tdff // 2, 128))
    while _est(tm_eff, tdff, tdff == dff_p) > budget and tm_eff > 64:
        tm_eff = max(64, _round_up(tm_eff // 2, 8))

    dff_pp = _round_up(dff_p, tdff)          # may add extra exact zero padding
    n_k = dff_pp // tdff
    resident = (n_k == 1)

    m_p = _round_up(m, tm_eff)
    est = _est(tm_eff, tdff, resident)
    vmem_limit = int(min(max(int(1.5 * est), 32 * _MIB), budget))

    # --- wrapper-side cast + conditional padding (skipped when aligned) ----
    x2d = x.reshape(m, d_model).astype(compute_dtype)
    w1c = w1.astype(compute_dtype)
    w2c = w2.astype(compute_dtype)
    b1_p = b1.astype(jnp.float32)
    b2_p = b2.astype(jnp.float32)

    if m_p != m or dm_p != d_model:
        x2d = jnp.pad(x2d, ((0, m_p - m), (0, dm_p - d_model)))
    if dm_p != d_model or dff_pp != d_ff:
        w1c = jnp.pad(w1c, ((0, dm_p - d_model), (0, dff_pp - d_ff)))
        w2c = jnp.pad(w2c, ((0, dff_pp - d_ff), (0, dm_p - d_model)))
    if dff_pp != d_ff:
        b1_p = jnp.pad(b1_p, (0, dff_pp - d_ff))
    if dm_p != d_model:
        b2_p = jnp.pad(b2_p, (0, dm_p - d_model))
    b1_p = b1_p.reshape(1, dff_pp)
    b2_p = b2_p.reshape(1, dm_p)

    def _wspec(shape, idx):
        if resident:   # constant index_map -> single-buffered, no re-DMA
            return pl.BlockSpec(shape, idx, pipeline_mode=pl.Buffered(1))
        return pl.BlockSpec(shape, idx)

    grid = (m_p // tm_eff, n_k)

    out2d = pl.pallas_call(
        functools.partial(_ffn_kernel, gelu_in_bf16=gelu_in_bf16),
        out_shape=jax.ShapeDtypeStruct((m_p, dm_p), x.dtype),
        grid_spec=pltpu.PrefetchScalarGridSpec(
            num_scalar_prefetch=0,
            grid=grid,
            in_specs=[
                pl.BlockSpec((tm_eff, dm_p), lambda i, k: (i, 0)),   # x row tile
                _wspec((dm_p, tdff), lambda i, k: (0, k)),           # w1
                _wspec((1, tdff), lambda i, k: (0, k)),              # b1
                _wspec((tdff, dm_p), lambda i, k: (k, 0)),           # w2
                pl.BlockSpec((1, dm_p), lambda i, k: (0, 0),
                             pipeline_mode=pl.Buffered(1)),          # b2 resident
            ],
            out_specs=pl.BlockSpec((tm_eff, dm_p), lambda i, k: (i, 0)),
            scratch_shapes=[pltpu.VMEM((tm_eff, dm_p), jnp.float32)],
        ),
        compiler_params=pltpu.CompilerParams(
            dimension_semantics=("parallel", "arbitrary"),
            vmem_limit_bytes=vmem_limit,
        ),
    )(x2d, w1c, b1_p, w2c, b2_p)

    if m_p != m or dm_p != d_model:
        out2d = out2d[:m, :d_model]
    return out2d.reshape(batch, seq, d_model)


def _init_params(key, d_model, d_ff, dtype=jnp.float32):
    """Deterministic init mimicking nn.Linear's uniform(-1/sqrt(fan_in), ...)."""
    k1, k2, k3, k4 = jax.random.split(key, 4)
    lim1 = 1.0 / math.sqrt(d_model)
    lim2 = 1.0 / math.sqrt(d_ff)
    # stored transposed vs torch (out,in) -> (in,out)
    w1 = jax.random.uniform(k1, (d_model, d_ff), dtype, -lim1, lim1)
    b1 = jax.random.uniform(k2, (d_ff,), dtype, -lim1, lim1)
    w2 = jax.random.uniform(k3, (d_ff, d_model), dtype, -lim2, lim2)
    b2 = jax.random.uniform(k4, (d_model,), dtype, -lim2, lim2)
    return w1, b1, w2, b2


def _reference(x, w1, b1, w2, b2):
    h = x @ w1 + b1
    g = 0.5 * h * (1.0 + jnp.tanh(_GELU_C * (h + 0.044715 * h ** 3)))
    return g @ w2 + b2


if __name__ == "__main__":
    batch, seq, d_model, d_ff = 2, 8, 32, 64

    key = jax.random.PRNGKey(0)
    kx, kp = jax.random.split(key)
    x = jax.random.normal(kx, (batch, seq, d_model), jnp.float32)
    w1, b1, w2, b2 = _init_params(kp, d_model, d_ff)

    out = positionwise_feed_forward(x, w1, b1, w2, b2)
    out = jax.block_until_ready(out)

    ref = _reference(x, w1, b1, w2, b2)
    assert out.shape == (batch, seq, d_model)
    # bf16 MXU operands vs f32 reference -> bf16-appropriate tolerance.
    assert jnp.allclose(out, ref, atol=5e-2, rtol=5e-2), "mismatch vs reference"

    print("KERNEL_OK")
</pallas_src>

<mosaic_0001>
module attributes {stable_mosaic.version = 11 : i64} {
  func.func @_ffn_kernel(%arg0: i32, %arg1: i32, %arg2: memref<8x128xbf16, #tpu.memory_space<vmem>>, %arg3: memref<128x128xbf16, #tpu.memory_space<vmem>>, %arg4: memref<1x128xf32, #tpu.memory_space<vmem>>, %arg5: memref<128x128xbf16, #tpu.memory_space<vmem>>, %arg6: memref<1x128xf32, #tpu.memory_space<vmem>>, %arg7: memref<8x128xf32, #tpu.memory_space<vmem>>, %arg8: memref<8x128xf32, #tpu.memory_space<vmem>>) attributes {dimension_semantics = [#tpu.dimension_semantics<parallel>, #tpu.dimension_semantics<arbitrary>], iteration_bounds = array<i64: 2, 1>, scalar_prefetch = 0 : i64, scratch_operands = 1 : i64, tpu.core_type = #tpu.core_type<tc>, window_params = [{transform_indices = @transform_0, window_bounds = array<i64: 8, 128>}, {pipeline_mode = #tpu.pipeline_mode<synchronous>, transform_indices = @transform_1, window_bounds = array<i64: 128, 128>}, {pipeline_mode = #tpu.pipeline_mode<synchronous>, transform_indices = @transform_2, window_bounds = array<i64: 1, 128>}, {pipeline_mode = #tpu.pipeline_mode<synchronous>, transform_indices = @transform_3, window_bounds = array<i64: 128, 128>}, {pipeline_mode = #tpu.pipeline_mode<synchronous>, transform_indices = @transform_4, window_bounds = array<i64: 1, 128>}, {transform_indices = @transform_5, window_bounds = array<i64: 8, 128>}]} {
    %c0_i32 = arith.constant 0 : i32
    %0 = arith.cmpi eq, %arg1, %c0_i32 : i32
    %1 = arith.extui %0 : i1 to i32
    %c0_i32_0 = arith.constant 0 : i32
    %2 = arith.cmpi ne, %1, %c0_i32_0 : i32
    scf.if %2 {
      %cst_19 = arith.constant 0.000000e+00 : f32
      %31 = vector.broadcast %cst_19 : f32 to vector<8x128xf32>
      %c0_20 = arith.constant 0 : index
      %c0_21 = arith.constant 0 : index
      %32 = vector.load %arg8[%c0_20, %c0_21] : memref<8x128xf32, #tpu.memory_space<vmem>>, vector<8x128xf32>
      tpu.vector_store %arg8[%c0_20, %c0_21], %31 {strides = array<i32>} : memref<8x128xf32, #tpu.memory_space<vmem>>, vector<8x128xf32>,
    } else {
    }
    %c0 = arith.constant 0 : index
    %c0_1 = arith.constant 0 : index
    %3 = vector.load %arg2[%c0, %c0_1] : memref<8x128xbf16, #tpu.memory_space<vmem>>, vector<8x128xbf16>
    %c0_2 = arith.constant 0 : index
    %c0_3 = arith.constant 0 : index
    %4 = vector.load %arg3[%c0_2, %c0_3] : memref<128x128xbf16, #tpu.memory_space<vmem>>, vector<128x128xbf16>
    %cst = arith.constant dense<0.000000e+00> : vector<8x128xf32>
    %5 = tpu.matmul %3, %4, %cst {dimension_numbers = #tpu.dot_dimension_numbers<[1], [0], [0], [1], [0, 0, 1, 1], [], []>} : vector<8x128xbf16>, vector<128x128xbf16>, vector<8x128xf32> -> vector<8x128xf32>
    %c0_4 = arith.constant 0 : index
    %c0_5 = arith.constant 0 : index
    %6 = vector.load %arg4[%c0_4, %c0_5] : memref<1x128xf32, #tpu.memory_space<vmem>>, vector<1x128xf32>
    %7 = vector.broadcast %6 : vector<1x128xf32> to vector<8x128xf32>
    %8 = arith.addf %5, %7 : vector<8x128xf32>
    %9 = arith.truncf %8 : vector<8x128xf32> to vector<8x128xbf16>
    %cst_6 = arith.constant 5.000000e-01 : bf16
    %10 = vector.broadcast %cst_6 : bf16 to vector<8x128xbf16>
    %11 = arith.mulf %10, %9 : vector<8x128xbf16>
    %12 = arith.mulf %9, %9 : vector<8x128xbf16>
    %13 = arith.mulf %12, %9 : vector<8x128xbf16>
    %cst_7 = arith.constant 4.467770e-02 : bf16
    %14 = vector.broadcast %cst_7 : bf16 to vector<8x128xbf16>
    %15 = arith.mulf %14, %13 : vector<8x128xbf16>
    %16 = arith.addf %9, %15 : vector<8x128xbf16>
    %cst_8 = arith.constant 7.968750e-01 : bf16
    %17 = vector.broadcast %cst_8 : bf16 to vector<8x128xbf16>
    %18 = arith.mulf %17, %16 : vector<8x128xbf16>
    %19 = math.tanh %18 : vector<8x128xbf16>
    %cst_9 = arith.constant 1.000000e+00 : bf16
    %20 = vector.broadcast %cst_9 : bf16 to vector<8x128xbf16>
    %21 = arith.addf %20, %19 : vector<8x128xbf16>
    %22 = arith.mulf %11, %21 : vector<8x128xbf16>
    %c0_10 = arith.constant 0 : index
    %c0_11 = arith.constant 0 : index
    %23 = vector.load %arg8[%c0_10, %c0_11] : memref<8x128xf32, #tpu.memory_space<vmem>>, vector<8x128xf32>
    %c0_12 = arith.constant 0 : index
    %c0_13 = arith.constant 0 : index
    %24 = vector.load %arg5[%c0_12, %c0_13] : memref<128x128xbf16, #tpu.memory_space<vmem>>, vector<128x128xbf16>
    %cst_14 = arith.constant dense<0.000000e+00> : vector<8x128xf32>
    %25 = tpu.matmul %22, %24, %cst_14 {dimension_numbers = #tpu.dot_dimension_numbers<[1], [0], [0], [1], [0, 0, 1, 1], [], []>} : vector<8x128xbf16>, vector<128x128xbf16>, vector<8x128xf32> -> vector<8x128xf32>
    %26 = arith.addf %23, %25 : vector<8x128xf32>
    %c0_15 = arith.constant 0 : index
    %c0_16 = arith.constant 0 : index
    %27 = vector.load %arg8[%c0_15, %c0_16] : memref<8x128xf32, #tpu.memory_space<vmem>>, vector<8x128xf32>
    tpu.vector_store %arg8[%c0_15, %c0_16], %26 {strides = array<i32>} : memref<8x128xf32, #tpu.memory_space<vmem>>, vector<8x128xf32>,
    %c0_i32_17 = arith.constant 0 : i32
    %28 = arith.cmpi eq, %arg1, %c0_i32_17 : i32
    %29 = arith.extui %28 : i1 to i32
    %c0_i32_18 = arith.constant 0 : i32
    %30 = arith.cmpi ne, %29, %c0_i32_18 : i32
    scf.if %30 {
      %c0_19 = arith.constant 0 : index
      %c0_20 = arith.constant 0 : index
      %31 = vector.load %arg8[%c0_19, %c0_20] : memref<8x128xf32, #tpu.memory_space<vmem>>, vector<8x128xf32>
      %c0_21 = arith.constant 0 : index
      %c0_22 = arith.constant 0 : index
      %32 = vector.load %arg6[%c0_21, %c0_22] : memref<1x128xf32, #tpu.memory_space<vmem>>, vector<1x128xf32>
      %33 = vector.broadcast %32 : vector<1x128xf32> to vector<8x128xf32>
      %34 = arith.addf %31, %33 : vector<8x128xf32>
      %c0_23 = arith.constant 0 : index
      %c0_24 = arith.constant 0 : index
      %35 = vector.load %arg7[%c0_23, %c0_24] : memref<8x128xf32, #tpu.memory_space<vmem>>, vector<8x128xf32>
      tpu.vector_store %arg7[%c0_23, %c0_24], %34 {strides = array<i32>} : memref<8x128xf32, #tpu.memory_space<vmem>>, vector<8x128xf32>,
    } else {
    }
    return
  }
  func.func @transform_0(%arg0: i32, %arg1: i32) -> (i32, i32) {
    %c0_i32 = arith.constant 0 : i32
    %c0_i32_0 = arith.constant 0 : i32
    return %arg0, %c0_i32 : i32, i32
  }
  func.func @transform_1(%arg0: i32, %arg1: i32) -> (i32, i32) {
    %c0_i32 = arith.constant 0 : i32
    %c0_i32_0 = arith.constant 0 : i32
    return %c0_i32, %arg1 : i32, i32
  }
  func.func @transform_2(%arg0: i32, %arg1: i32) -> (i32, i32) {
    %c0_i32 = arith.constant 0 : i32
    %c0_i32_0 = arith.constant 0 : i32
    return %c0_i32, %arg1 : i32, i32
  }
  func.func @transform_3(%arg0: i32, %arg1: i32) -> (i32, i32) {
    %c0_i32 = arith.constant 0 : i32
    %c0_i32_0 = arith.constant 0 : i32
    return %arg1, %c0_i32 : i32, i32
  }
  func.func @transform_4(%arg0: i32, %arg1: i32) -> (i32, i32) {
    %c0_i32 = arith.constant 0 : i32
    %c0_i32_0 = arith.constant 0 : i32
    %c0_i32_1 = arith.constant 0 : i32
    return %c0_i32, %c0_i32_0 : i32, i32
  }
  func.func @transform_5(%arg0: i32, %arg1: i32) -> (i32, i32) {
    %c0_i32 = arith.constant 0 : i32
    %c0_i32_0 = arith.constant 0 : i32
    return %arg0, %c0_i32 : i32, i32
  }
}

</mosaic_0001>

<llo_original>
// kernel: positionwise_feed_forward.1
$region0: #{positionwise_feed_forward.1}
  #allocation0 [shape = 'u32[]', space=smem, size = 0x4, offset = 0x4, fixed_abs, tag = 'smem constant byte address 0x4 - core index']
  #allocation1 [shape = 'u32[144,128]{1,0:T(1,128)}', space=vmem, size = 0x12000, scoped, tag = 'internal scratch']
  #allocation2 [shape = 'f32[8,128]{1,0:T(8,128)}', space=vmem, size = 0x1000, scoped, tag = 'scratch operand']
  %s0 = inlined_call_operand.vmem [shape: bf16[16,128], index: 0, kind: input, shape index: {}]
  %s1 = inlined_call_operand.vmem [shape: bf16[128,128], index: 1, kind: input, shape index: {}]
  %s2 = inlined_call_operand.vmem [shape: f32[1,128], index: 2, kind: input, shape index: {}]
  %s3 = inlined_call_operand.vmem [shape: bf16[128,128], index: 3, kind: input, shape index: {}]
  %s4 = inlined_call_operand.vmem [shape: f32[1,128], index: 4, kind: input, shape index: {}]
  %s5 = inlined_call_operand.vmem [shape: f32[16,128], index: 5, kind: output, shape index: {}]
  %s6 = sld [smem:[#allocation0]]
  $region61: #{positionwise_feed_forward.1} parent=0
    _
  %s8 = ssub.s32 1, %s6
  %s9 = scalar_select 0, %s8, %s6
  loop: start=0, step=1, limit=4
  $region2: #{positionwise_feed_forward.1} parent=0 // loop_pre_header
    _
  $region3: #{positionwise_feed_forward.1} parent=0 // loop_header
    %s11 = sphi 0, %s15
    %p12 = scmp.ge.s32.totalorder %s11, 4
    %s18 = sphi 0, %s30
    %s19 = sphi 0, %s26
    %s20 = sphi 0, %s18
    %s21 = sphi 0, %s19
    %s22 = sphi 0, %s20
    %s23 = sphi 0, %s21
    %s33 = sphi 0, %s35
    %s36 = sphi 0, %s33
    %s37 = sphi 0, %s36
    %s53 = sphi 0, %s37
    %s59 = sphi 0, %s61
    %s62 = sphi 0, %s59
    %s63 = sphi 0, %s62
    %s79 = sphi 0, %s63
    %s85 = sphi 0, %s87
    %s88 = sphi 0, %s85
    %s89 = sphi 0, %s88
    %s105 = sphi 0, %s89
    %s111 = sphi 0, %s113
    %s114 = sphi 0, %s111
    %s115 = sphi 0, %s114
    %s131 = sphi 0, %s115
    %s135 = sphi 0, %s135
    %s137 = sphi 0, %s135
    %s138 = sphi 0, %s137
    %s152 = sphi 0, %s138
    %s158 = sphi 0, %s160
    %s161 = sphi 0, %s158
    %s162 = sphi 0, %s161
    %s178 = sphi 0, %s162
  $region4: #{positionwise_feed_forward.1} parent=0 // loop_header_branch
    %14 = sbr.rel (%p12) target = $region8
  $region5: #{positionwise_feed_forward.1} parent=0 // loop_body
    %s16 = ssub.s32 %s11, 1
    %s17 = ssub.s32 %s11, 2
    %s24 = sadd.s32 1, %s19
    %p25 = scmp.ge.s32.totalorder %s24, 1
    %s26 = scalar_select %p25, 0, %s24
    %s27 = sadd.s32 1, %s18
    %s28 = scalar_select %p25, %s27, %s18
    %p29 = scmp.ge.s32.totalorder %s28, 2
    %s30 = scalar_select %p29, 0, %s28
    %s31 = ssub.s32 %s18, %s30
    %p32 = scmp.eq.s32.totalorder %s31, 0
    %s34 = sadd.s32 %s33, 1
    %s35 = scalar_select %p32, %s33, %s34
    %p38 = pneg %p32
    %p39 = scmp.eq.s32.totalorder %s11, 1
    %p40 = por %p38, %p39
    %p41 = scmp.ne.s32.totalorder %s33, %s36
    %p42 = scmp.eq.s32.totalorder %s11, 0
    %p43 = por %p41, %p42
    %p44 = scmp.ne.s32.totalorder %s33, %s36
    %p45 = scmp.eq.s32.totalorder %s16, 1
    %p46 = por %p44, %p45
    %p47 = scmp.ne.s32.totalorder %s36, %s37
    %p48 = scmp.eq.s32.totalorder %s16, 0
    %p49 = por %p47, %p48
    %p50 = scmp.ne.s32.totalorder %s36, %s37
    %p51 = scmp.eq.s32.totalorder %s17, 1
    %p52 = por %p50, %p51
    %p54 = scmp.ne.s32.totalorder %s37, %s53
    %p55 = scmp.eq.s32.totalorder %s17, 0
    %p56 = por %p54, %p55
    %s57 = ssub.s32 %s19, %s26
    %p58 = scmp.eq.s32.totalorder %s57, 0
    %s60 = sadd.s32 %s59, 1
    %s61 = scalar_select %p58, %s59, %s60
    %p64 = pneg %p58
    %p65 = scmp.eq.s32.totalorder %s11, 1
    %p66 = por %p64, %p65
    %p67 = scmp.ne.s32.totalorder %s59, %s62
    %p68 = scmp.eq.s32.totalorder %s11, 0
    %p69 = por %p67, %p68
    %p70 = scmp.ne.s32.totalorder %s59, %s62
    %p71 = scmp.eq.s32.totalorder %s16, 1
    %p72 = por %p70, %p71
    %p73 = scmp.ne.s32.totalorder %s62, %s63
    %p74 = scmp.eq.s32.totalorder %s16, 0
    %p75 = por %p73, %p74
    %p76 = scmp.ne.s32.totalorder %s62, %s63
    %p77 = scmp.eq.s32.totalorder %s17, 1
    %p78 = por %p76, %p77
    %p80 = scmp.ne.s32.totalorder %s63, %s79
    %p81 = scmp.eq.s32.totalorder %s17, 0
    %p82 = por %p80, %p81
    %s83 = ssub.s32 %s19, %s26
    %p84 = scmp.eq.s32.totalorder %s83, 0
    %s86 = sadd.s32 %s85, 1
    %s87 = scalar_select %p84, %s85, %s86
    %p90 = pneg %p84
    %p91 = scmp.eq.s32.totalorder %s11, 1
    %p92 = por %p90, %p91
    %p93 = scmp.ne.s32.totalorder %s85, %s88
    %p94 = scmp.eq.s32.totalorder %s11, 0
    %p95 = por %p93, %p94
    %p96 = scmp.ne.s32.totalorder %s85, %s88
    %p97 = scmp.eq.s32.totalorder %s16, 1
    %p98 = por %p96, %p97
    %p99 = scmp.ne.s32.totalorder %s88, %s89
    %p100 = scmp.eq.s32.totalorder %s16, 0
    %p101 = por %p99, %p100
    %p102 = scmp.ne.s32.totalorder %s88, %s89
    %p103 = scmp.eq.s32.totalorder %s17, 1
    %p104 = por %p102, %p103
    %p106 = scmp.ne.s32.totalorder %s89, %s105
    %p107 = scmp.eq.s32.totalorder %s17, 0
    %p108 = por %p106, %p107
    %s109 = ssub.s32 %s19, %s26
    %p110 = scmp.eq.s32.totalorder %s109, 0
    %s112 = sadd.s32 %s111, 1
    %s113 = scalar_select %p110, %s111, %s112
    %p116 = pneg %p110
    %p117 = scmp.eq.s32.totalorder %s11, 1
    %p118 = por %p116, %p117
    %p119 = scmp.ne.s32.totalorder %s111, %s114
    %p120 = scmp.eq.s32.totalorder %s11, 0
    %p121 = por %p119, %p120
    %p122 = scmp.ne.s32.totalorder %s111, %s114
    %p123 = scmp.eq.s32.totalorder %s16, 1
    %p124 = por %p122, %p123
    %p125 = scmp.ne.s32.totalorder %s114, %s115
    %p126 = scmp.eq.s32.totalorder %s16, 0
    %p127 = por %p125, %p126
    %p128 = scmp.ne.s32.totalorder %s114, %s115
    %p129 = scmp.eq.s32.totalorder %s17, 1
    %p130 = por %p128, %p129
    %p132 = scmp.ne.s32.totalorder %s115, %s131
    %p133 = scmp.eq.s32.totalorder %s17, 0
    %p134 = por %p132, %p133
    %s136 = sadd.s32 %s135, 1
    %p139 = scmp.eq.s32.totalorder %s11, 1
    %p140 = scmp.ne.s32.totalorder %s135, %s137
    %p141 = scmp.eq.s32.totalorder %s11, 0
    %p142 = por %p140, %p141
    %p143 = scmp.ne.s32.totalorder %s135, %s137
    %p144 = scmp.eq.s32.totalorder %s16, 1
    %p145 = por %p143, %p144
    %p146 = scmp.ne.s32.totalorder %s137, %s138
    %p147 = scmp.eq.s32.totalorder %s16, 0
    %p148 = por %p146, %p147
    %p149 = scmp.ne.s32.totalorder %s137, %s138
    %p150 = scmp.eq.s32.totalorder %s17, 1
    %p151 = por %p149, %p150
    %p153 = scmp.ne.s32.totalorder %s138, %s152
    %p154 = scmp.eq.s32.totalorder %s17, 0
    %p155 = por %p153, %p154
    %s156 = ssub.s32 %s18, %s30
    %p157 = scmp.eq.s32.totalorder %s156, 0
    %s159 = sadd.s32 %s158, 1
    %s160 = scalar_select %p157, %s158, %s159
    %p163 = pneg %p157
    %p164 = scmp.eq.s32.totalorder %s11, 1
    %p165 = por %p163, %p164
    %p166 = scmp.ne.s32.totalorder %s158, %s161
    %p167 = scmp.eq.s32.totalorder %s11, 0
    %p168 = por %p166, %p167
    %p169 = scmp.ne.s32.totalorder %s158, %s161
    %p170 = scmp.eq.s32.totalorder %s16, 1
    %p171 = por %p169, %p170
    %p172 = scmp.ne.s32.totalorder %s161, %s162
    %p173 = scmp.eq.s32.totalorder %s16, 0
    %p174 = por %p172, %p173
    %p175 = scmp.ne.s32.totalorder %s161, %s162
    %p176 = scmp.eq.s32.totalorder %s17, 1
    %p177 = por %p175, %p176
    %p179 = scmp.ne.s32.totalorder %s162, %s178
    %p180 = scmp.eq.s32.totalorder %s17, 0
    %p181 = por %p179, %p180
    %p182 = scmp.le.s32.totalorder 1, %s11
    %p183 = scmp.lt.s32.totalorder %s11, 3
    %p184 = pnand %p182, %p183
    %p185 = pneg %p184
    // Predicated region
    $region9: #{positionwise_feed_forward.1} parent=5 // pred_check
      _
    $region10: #{positionwise_feed_forward.1} parent=5 // pred_check_branch
      %187 = sbr.rel (%p184) target = $region12
    $region11: #{positionwise_feed_forward.1} parent=5 // pred_region
      %s188 = ssub.s32 %s11, 1
      // Predicated region
      $region13: #{positionwise_feed_forward.1} parent=11 // pred_check
        %p189 = pneg %p75
      $region14: #{positionwise_feed_forward.1} parent=11 // pred_check_branch
        %191 = sbr.rel (%p189) target = $region16
      $region15: #{positionwise_feed_forward.1} parent=11 // pred_region
        %p192 = scmp.lt.s32.totalorder %s21, 0
        %s193 = scalar_select %p192, %s21, 0
        %s194 = smul.addr %s193, 4
        %s195 = scalar_lea.vmem %s1, %s194
      $region16: #{positionwise_feed_forward.1} parent=11 // pred_fallthru
        _
      // Predicated region
      $region17: #{positionwise_feed_forward.1} parent=11 // pred_check
        %p196 = pneg %p101
      $region18: #{positionwise_feed_forward.1} parent=11 // pred_check_branch
        %198 = sbr.rel (%p196) target = $region20
      $region19: #{positionwise_feed_forward.1} parent=11 // pred_region
        %p199 = scmp.lt.s32.totalorder %s21, 0
        %s200 = scalar_select %p199, %s21, 0
        %s201 = scalar_lea.vmem %s2, %s200
      $region20: #{positionwise_feed_forward.1} parent=11 // pred_fallthru
        _
      // Predicated region
      $region21: #{positionwise_feed_forward.1} parent=11 // pred_check
        %p202 = pneg %p127
      $region22: #{positionwise_feed_forward.1} parent=11 // pred_check_branch
        %204 = sbr.rel (%p202) target = $region24
      $region23: #{positionwise_feed_forward.1} parent=11 // pred_region
        %s205 = smul.u32 16, %s21
        %p206 = scmp.lt.s32.totalorder %s205, 15
        %s207 = scalar_select %p206, %s205, 15
        %s208 = smul.addr %s207, 4
        %s209 = scalar_lea.vmem %s3, %s208
        %s210 = smul.u32 16, %s21
      $region24: #{positionwise_feed_forward.1} parent=11 // pred_fallthru
        _
      // Predicated region
      $region25: #{positionwise_feed_forward.1} parent=11 // pred_check
        %p211 = pneg %p148
      $region26: #{positionwise_feed_forward.1} parent=11 // pred_check_branch
        %213 = sbr.rel (%p211) target = $region28
      $region27: #{positionwise_feed_forward.1} parent=11 // pred_region
        _
      $region28: #{positionwise_feed_forward.1} parent=11 // pred_fallthru
        _
    $region12: #{positionwise_feed_forward.1} parent=5 // pred_fallthru
      _
    %p214 = scmp.lt.s32.totalorder %s11, 2
    // Predicated region
    $region29: #{positionwise_feed_forward.1} parent=5 // pred_check
      %p215 = pneg %p214
    $region30: #{positionwise_feed_forward.1} parent=5 // pred_check_branch
      %217 = sbr.rel (%p215) target = $region32
    $region31: #{positionwise_feed_forward.1} parent=5 // pred_region
      // Predicated region
      $region33: #{positionwise_feed_forward.1} parent=31 // pred_check
        %p218 = pneg %p43
      $region34: #{positionwise_feed_forward.1} parent=31 // pred_check_branch
        %220 = sbr.rel (%p218) target = $region36
      $region35: #{positionwise_feed_forward.1} parent=31 // pred_region
        %p221 = scmp.lt.s32.totalorder %s18, 1
        %s222 = scalar_select %p221, %s18, 1
        %s223 = smul.addr %s222, 4
        %s224 = scalar_lea.vmem %s0, %s223
      $region36: #{positionwise_feed_forward.1} parent=31 // pred_fallthru
        _
    $region32: #{positionwise_feed_forward.1} parent=5 // pred_fallthru
      _
    %p225 = scmp.le.s32.totalorder 1, %s11
    %p226 = scmp.lt.s32.totalorder %s11, 3
    %p227 = pnand %p225, %p226
    %p228 = pneg %p227
    // Predicated region
    $region37: #{positionwise_feed_forward.1} parent=5 // pred_check
      _
    $region38: #{positionwise_feed_forward.1} parent=5 // pred_check_branch
      %230 = sbr.rel (%p227) target = $region40
    $region39: #{positionwise_feed_forward.1} parent=5 // pred_region
      %s231 = ssub.s32 %s11, 1
      %p232 = scmp.lt.s32.totalorder %s20, 1
      %s233 = scalar_select %p232, %s20, 1
      %s234 = smul.addr %s233, 4
      %s235 = scalar_lea.vmem %s0, %s234
      %p236 = pneg %p49
      %p237 = pneg %p46
      %p238 = scmp.lt.s32.totalorder %s21, 0
      %s239 = scalar_select %p238, %s21, 0
      %s240 = smul.addr %s239, 4
      %s241 = scalar_lea.vmem %s1, %s240
      %p242 = pneg %p75
      %p243 = pneg %p72
      %p244 = scmp.lt.s32.totalorder %s21, 0
      %s245 = scalar_select %p244, %s21, 0
      %s246 = scalar_lea.vmem %s2, %s245
      %p247 = pneg %p101
      %p248 = pneg %p98
      %s249 = smul.u32 16, %s21
      %p250 = scmp.lt.s32.totalorder %s249, 15
      %s251 = scalar_select %p250, %s249, 15
      %s252 = smul.addr %s251, 4
      %s253 = scalar_lea.vmem %s3, %s252
      %p254 = pneg %p127
      %p255 = pneg %p124
      %p256 = pneg %p148
      %p257 = pneg %p145
      %p258 = pneg %p174
      %p259 = pneg %p171
      %p260 = scmp.lt.s32.totalorder %s20, 1
      %s261 = scalar_select %p260, %s20, 1
      %s262 = smul.addr %s261, 8
      %s263 = scalar_lea.vmem %s5, %s262
      %p264 = scmp.lt.s32.totalorder %s20, 1
      %s265 = scalar_select %p264, %s20, 1
      %s266 = smul.addr %s265, 4
      %s267 = scalar_lea.vmem %s0, %s266
      %p268 = scmp.lt.s32.totalorder %s21, 0
      %s269 = scalar_select %p268, %s21, 0
      %s270 = smul.addr %s269, 4
      %s271 = scalar_lea.vmem %s1, %s270
      %p272 = scmp.lt.s32.totalorder %s21, 0
      %s273 = scalar_select %p272, %s21, 0
      %s274 = scalar_lea.vmem %s2, %s273
      %s275 = smul.u32 16, %s21
      %p276 = scmp.lt.s32.totalorder %s275, 15
      %s277 = scalar_select %p276, %s275, 15
      %s278 = smul.addr %s277, 4
      %s279 = scalar_lea.vmem %s3, %s278
      %s280 = smul.u32 16, %s21
      %p281 = scmp.lt.s32.totalorder %s20, 1
      %s282 = scalar_select %p281, %s20, 1
      %s283 = smul.addr %s282, 8
      %s284 = scalar_lea.vmem %s5, %s283
      %p290 = scmp.eq.s32.totalorder %s21, 0
      // Predicated region
      $region41: #{positionwise_feed_forward.1} parent=39 // pred_check
        %p291 = pneg %p290
      $region42: #{positionwise_feed_forward.1} parent=39 // pred_check_branch
        %293 = sbr.rel (%p291) target = $region44
      $region43: #{positionwise_feed_forward.1} parent=39 // pred_region
        %294 = vst [vmem:[#allocation2] sm:$0xff] 0.0
      $region44: #{positionwise_feed_forward.1} parent=39 // pred_fallthru
        _
      %v295 = vld [vmem:[%s267] sm:$0xf]
      %v296 = vld [vmem:[%s271] sm:$0xf]
      %v297 = vld [vmem:[%s271 + $0x4] sm:$0xf]
      %v298 = vld [vmem:[%s271 + $0x8] sm:$0xf]
      %v299 = vld [vmem:[%s271 + $0xc] sm:$0xf]
      %v300 = vld [vmem:[%s271 + $0x10] sm:$0xf]
      %v301 = vld [vmem:[%s271 + $0x14] sm:$0xf]
      %v302 = vld [vmem:[%s271 + $0x18] sm:$0xf]
      %v303 = vld [vmem:[%s271 + $0x1c] sm:$0xf]
      %v304 = vld [vmem:[%s271 + $0x20] sm:$0xf]
      %v305 = vld [vmem:[%s271 + $0x24] sm:$0xf]
      %v306 = vld [vmem:[%s271 + $0x28] sm:$0xf]
      %v307 = vld [vmem:[%s271 + $0x2c] sm:$0xf]
      %v308 = vld [vmem:[%s271 + $0x30] sm:$0xf]
      %v309 = vld [vmem:[%s271 + $0x34] sm:$0xf]
      %v310 = vld [vmem:[%s271 + $0x38] sm:$0xf]
      %v311 = vld [vmem:[%s271 + $0x3c] sm:$0xf]
      %v312 = vld [vmem:[%s274] sm:$0x1]
      %v314 = vlaneseq
      %v315 = vshrl.u32 %v314, 7
      %v316 = vsub.s32 0, %v315
      %v317 = vrot.slane %v312, %v316
      %v335 = vunpack.c.l.b16 %v296
      %v336 = vunpack.c.l.b16 %v297
      %v337 = vunpack.c.l.b16 %v298
      %v338 = vunpack.c.l.b16 %v299
      %v339 = vunpack.c.l.b16 %v300
      %v340 = vunpack.c.l.b16 %v301
      %v341 = vunpack.c.l.b16 %v302
      %v342 = vunpack.c.l.b16 %v303
      %v343 = vunpack.c.l.b16 %v304
      %v344 = vunpack.c.l.b16 %v305
      %v345 = vunpack.c.l.b16 %v306
      %v346 = vunpack.c.l.b16 %v307
      %v347 = vunpack.c.l.b16 %v308
      %v348 = vunpack.c.l.b16 %v309
      %v349 = vunpack.c.l.b16 %v310
      %v350 = vunpack.c.l.b16 %v311
      %v351 = vpack.c.b16 %v336, %v335
      %v352 = vpack.c.b16 %v338, %v337
      %v353 = vpack.c.b16 %v340, %v339
      %v354 = vpack.c.b16 %v342, %v341
      %v355 = vpack.c.b16 %v344, %v343
      %v356 = vpack.c.b16 %v346, %v345
      %v357 = vpack.c.b16 %v348, %v347
      %v358 = vpack.c.b16 %v350, %v349
      %367 = vmatprep.subr.bf16.mxu0 0
      %368 = vmatpush1.bf16.msra.mxu0 %v358
      %369 = vmatprep.subr.bf16.mxu0 0
      %370 = vmatpush1.bf16.msra.mxu0 %v357
      %371 = vmatprep.subr.bf16.mxu0 0
      %372 = vmatpush1.bf16.msra.mxu0 %v356
      %373 = vmatprep.subr.bf16.mxu0 0
      %374 = vmatpush1.bf16.msra.mxu0 %v355
      %375 = vmatprep.subr.bf16.mxu0 0
      %376 = vmatpush1.bf16.msra.mxu0 %v354
      %377 = vmatprep.subr.bf16.mxu0 0
      %378 = vmatpush1.bf16.msra.mxu0 %v353
      %379 = vmatprep.subr.bf16.mxu0 0
      %380 = vmatpush1.bf16.msra.mxu0 %v352
      %381 = vmatprep.subr.bf16.mxu0 0
      %382 = vmatpush1.bf16.msra.mxu0 %v351
      %383 = vmatprep.subr.bf16.mxu0 0
      %384 = vmatpush2.bf16.msra.mxu0 0
      %385 = vmatprep.subr.bf16.mxu0 0
      %386 = vmatpush2.bf16.msra.mxu0 0
      %387 = vmatprep.subr.bf16.mxu0 0
      %388 = vmatpush2.bf16.msra.mxu0 0
      %389 = vmatprep.subr.bf16.mxu0 0
      %390 = vmatpush2.bf16.msra.mxu0 0
      %391 = vmatprep.subr.bf16.mxu0 0
      %392 = vmatpush2.bf16.msra.mxu0 0
      %393 = vmatprep.subr.bf16.mxu0 0
      %394 = vmatpush2.bf16.msra.mxu0 0
      %395 = vmatprep.subr.bf16.mxu0 0
      %396 = vmatpush2.bf16.msra.mxu0 0
      %397 = vmatprep.subr.bf16.mxu0 0
      %398 = vmatpush2.bf16.msra.mxu0 0
      %399 = vmatprep.mubr.bf16.mxu0 0
      %400 = vmatmul.mubr.bf16.gmra.mxu0 %v295
      %v401 = vpop.f32.mrf.mxu0
      %v402 = vadd.f32 %v317, %v401
      %v403 = vpop.f32.mrf.mxu0
      %v404 = vpop.f32.mrf.mxu0
      %v405 = vpop.f32.mrf.mxu0
      %406 = vdwg.mxu0
      %v407 = vpack.c.bf16 %v402, %v402
      %v408 = vmul.bf16 %v407, 1056980736
      %v409 = vmul.bf16 %v407, %v407
      %v410 = vmul.bf16 %v409, %v407
      %v411 = vmul.bf16 %v410, 1027030327
      %v412 = vadd.bf16 %v407, %v411
      %v413 = vmul.bf16 %v412, 1061961548
      %v414 = vtanh.bf16.pop %v413
      %v415 = vadd.bf16 %v414, 1065369472
      %v416 = vmul.bf16 %v408, %v415
      %v417 = vld [vmem:[#allocation2] sm:$0xff]
      %v418 = vld [vmem:[%s279] sm:$0xf]
      %v419 = vld [vmem:[%s279 + $0x4] sm:$0xf]
      %v420 = vld [vmem:[%s279 + $0x8] sm:$0xf]
      %v421 = vld [vmem:[%s279 + $0xc] sm:$0xf]
      %v422 = vld [vmem:[%s279 + $0x10] sm:$0xf]
      %v423 = vld [vmem:[%s279 + $0x14] sm:$0xf]
      %v424 = vld [vmem:[%s279 + $0x18] sm:$0xf]
      %v425 = vld [vmem:[%s279 + $0x1c] sm:$0xf]
      %v426 = vld [vmem:[%s279 + $0x20] sm:$0xf]
      %v427 = vld [vmem:[%s279 + $0x24] sm:$0xf]
      %v428 = vld [vmem:[%s279 + $0x28] sm:$0xf]
      %v429 = vld [vmem:[%s279 + $0x2c] sm:$0xf]
      %v430 = vld [vmem:[%s279 + $0x30] sm:$0xf]
      %v431 = vld [vmem:[%s279 + $0x34] sm:$0xf]
      %v432 = vld [vmem:[%s279 + $0x38] sm:$0xf]
      %v433 = vld [vmem:[%s279 + $0x3c] sm:$0xf]
      %v450 = vunpack.c.l.b16 %v418
      %v451 = vunpack.c.l.b16 %v419
      %v452 = vunpack.c.l.b16 %v420
      %v453 = vunpack.c.l.b16 %v421
      %v454 = vunpack.c.l.b16 %v422
      %v455 = vunpack.c.l.b16 %v423
      %v456 = vunpack.c.l.b16 %v424
      %v457 = vunpack.c.l.b16 %v425
      %v458 = vunpack.c.l.b16 %v426
      %v459 = vunpack.c.l.b16 %v427
      %v460 = vunpack.c.l.b16 %v428
      %v461 = vunpack.c.l.b16 %v429
      %v462 = vunpack.c.l.b16 %v430
      %v463 = vunpack.c.l.b16 %v431
      %v464 = vunpack.c.l.b16 %v432
      %v465 = vunpack.c.l.b16 %v433
      %v466 = vpack.c.b16 %v451, %v450
      %v467 = vpack.c.b16 %v453, %v452
      %v468 = vpack.c.b16 %v455, %v454
      %v469 = vpack.c.b16 %v457, %v456
      %v470 = vpack.c.b16 %v459, %v458
      %v471 = vpack.c.b16 %v461, %v460
      %v472 = vpack.c.b16 %v463, %v462
      %v473 = vpack.c.b16 %v465, %v464
      %482 = vmatprep.subr.bf16.mxu0 0
      %483 = vmatpush1.bf16.msra.mxu0 %v473
      %484 = vmatprep.subr.bf16.mxu0 0
      %485 = vmatpush1.bf16.msra.mxu0 %v472
      %486 = vmatprep.subr.bf16.mxu0 0
      %487 = vmatpush1.bf16.msra.mxu0 %v471
      %488 = vmatprep.subr.bf16.mxu0 0
      %489 = vmatpush1.bf16.msra.mxu0 %v470
      %490 = vmatprep.subr.bf16.mxu0 0
      %491 = vmatpush1.bf16.msra.mxu0 %v469
      %492 = vmatprep.subr.bf16.mxu0 0
      %493 = vmatpush1.bf16.msra.mxu0 %v468
      %494 = vmatprep.subr.bf16.mxu0 0
      %495 = vmatpush1.bf16.msra.mxu0 %v467
      %496 = vmatprep.subr.bf16.mxu0 0
      %497 = vmatpush1.bf16.msra.mxu0 %v466
      %498 = vmatprep.subr.bf16.mxu0 0
      %499 = vmatpush2.bf16.msra.mxu0 0
      %500 = vmatprep.subr.bf16.mxu0 0
      %501 = vmatpush2.bf16.msra.mxu0 0
      %502 = vmatprep.subr.bf16.mxu0 0
      %503 = vmatpush2.bf16.msra.mxu0 0
      %504 = vmatprep.subr.bf16.mxu0 0
      %505 = vmatpush2.bf16.msra.mxu0 0
      %506 = vmatprep.subr.bf16.mxu0 0
      %507 = vmatpush2.bf16.msra.mxu0 0
      %508 = vmatprep.subr.bf16.mxu0 0
      %509 = vmatpush2.bf16.msra.mxu0 0
      %510 = vmatprep.subr.bf16.mxu0 0
      %511 = vmatpush2.bf16.msra.mxu0 0
      %512 = vmatprep.subr.bf16.mxu0 0
      %513 = vmatpush2.bf16.msra.mxu0 0
      %514 = vmatprep.mubr.bf16.mxu0 0
      %515 = vmatmul.mubr.bf16.gmra.mxu0 %v416
      %v516 = vpop.f32.mrf.mxu0
      %v517 = vadd.f32 0.0, %v516
      %v518 = vpop.f32.mrf.mxu0
      %v519 = vpop.f32.mrf.mxu0
      %v520 = vpop.f32.mrf.mxu0
      %521 = vdwg.mxu0
      %v522 = vadd.f32 %v417, %v517
      %523 = vst [vmem:[#allocation2] sm:$0xff] %v522
      // Predicated region
      $region45: #{positionwise_feed_forward.1} parent=39 // pred_check
        %p524 = pneg %p290
      $region46: #{positionwise_feed_forward.1} parent=39 // pred_check_branch
        %526 = sbr.rel (%p524) target = $region48
      $region47: #{positionwise_feed_forward.1} parent=39 // pred_region
        %v527 = vld [vmem:[#allocation2] sm:$0xff]
        %v528 = vld [vmem:[%s4] sm:$0x1]
        %v530 = vlaneseq
        %v531 = vshrl.u32 %v530, 7
        %v532 = vsub.s32 0, %v531
        %v533 = vrot.slane %v528, %v532
        %v535 = vadd.f32 %v527, %v533
        %536 = vst [vmem:[%s284] sm:$0xff] %v535
      $region48: #{positionwise_feed_forward.1} parent=39 // pred_fallthru
        _
      %p537 = scmp.lt.s32.totalorder %s20, 1
      %s538 = scalar_select %p537, %s20, 1
      %s539 = smul.addr %s538, 8
      %s540 = scalar_lea.vmem %s5, %s539
      // Predicated region
      $region49: #{positionwise_feed_forward.1} parent=39 // pred_check
        %p541 = pneg %p171
      $region50: #{positionwise_feed_forward.1} parent=39 // pred_check_branch
        %543 = sbr.rel (%p541) target = $region52
      $region51: #{positionwise_feed_forward.1} parent=39 // pred_region
        _
      $region52: #{positionwise_feed_forward.1} parent=39 // pred_fallthru
        _
    $region40: #{positionwise_feed_forward.1} parent=5 // pred_fallthru
      _
    %p544 = scmp.le.s32.totalorder 2, %s11
    // Predicated region
    $region53: #{positionwise_feed_forward.1} parent=5 // pred_check
      %p545 = pneg %p544
    $region54: #{positionwise_feed_forward.1} parent=5 // pred_check_branch
      %547 = sbr.rel (%p545) target = $region56
    $region55: #{positionwise_feed_forward.1} parent=5 // pred_region
      %s548 = ssub.s32 %s11, 2
      // Predicated region
      $region57: #{positionwise_feed_forward.1} parent=55 // pred_check
        %p549 = pneg %p177
      $region58: #{positionwise_feed_forward.1} parent=55 // pred_check_branch
        %551 = sbr.rel (%p549) target = $region60
      $region59: #{positionwise_feed_forward.1} parent=55 // pred_region
        %p552 = scmp.lt.s32.totalorder %s22, 1
        %s553 = scalar_select %p552, %s22, 1
        %s554 = smul.addr %s553, 8
        %s555 = scalar_lea.vmem %s5, %s554
      $region60: #{positionwise_feed_forward.1} parent=55 // pred_fallthru
        _
    $region56: #{positionwise_feed_forward.1} parent=5 // pred_fallthru
      _
  $region6: #{positionwise_feed_forward.1} parent=0 // loop_footer
    %s15 = sadd.s32 1, %s11
  $region7: #{positionwise_feed_forward.1} parent=0 // loop_footer_branch
    %10 = sbr.rel target = $region3
  $region8: #{positionwise_feed_forward.1} parent=0 // loop_exit
    _

</llo_original>
